<compile_context>
chip_gen: v5e
topology: v5e:2x2
jax: 0.10.0
libtpu: 0.0.40
codegen_flags: <defaults>
</compile_context>

<pallas_src>
import jax
import jax.numpy as jnp
from jax.experimental import pallas as pl
from jax.experimental.pallas import tpu as pltpu

_LANES = 512                      # lane-dense width: multiple of 128 (unmasked vst)
_ALIGN = 8 * _LANES               # 4096 elements: one (8, 512) sublane-aligned chunk
_TILE_ROWS = 2048                 # (2048, 512) f32 block = 4 MiB per buffer
_SMALL_ROWS = 256                 # <= ~0.5 MiB f32 -> single full-array block
_VMEM_LIMIT = 32 * 1024 * 1024    # headroom for 2 in + 2 out 4 MiB buffers (all gens)


def _scale_shift_kernel(x_ref, o_ref):
    # Elementwise hot path on the whole VMEM tile: y = x * 2 + 3
    o_ref[...] = x_ref[...] * 2 + 3


def _round_up(v, m):
    return ((v + m - 1) // m) * m


def _run_slab(x2):
    """Run the kernel on a lane-dense (rows, _LANES) slab.

    Preconditions: rows <= _SMALL_ROWS (single full-array block is allowed to
    have a non-multiple-of-8 row count) or rows % 8 == 0 (tiled path).
    """
    rows, lanes = x2.shape
    if rows <= _SMALL_ROWS:
        tile_rows = rows                               # one full-array block
    else:
        # At least 2 grid steps (pipelining / 2-TC sharding), capped at 4 MiB.
        tile_rows = min(_TILE_ROWS, _round_up(pl.cdiv(rows, 2), 8))
    grid = pl.cdiv(rows, tile_rows)                    # partial edge block OK

    return pl.pallas_call(
        _scale_shift_kernel,
        out_shape=jax.ShapeDtypeStruct((rows, lanes), x2.dtype),
        grid_spec=pltpu.PrefetchScalarGridSpec(
            num_scalar_prefetch=0,
            grid=(grid,),
            in_specs=[pl.BlockSpec((tile_rows, lanes), lambda i: (i, 0))],
            out_specs=pl.BlockSpec((tile_rows, lanes), lambda i: (i, 0)),
        ),
        compiler_params=pltpu.CompilerParams(
            dimension_semantics=("parallel",),
            vmem_limit_bytes=_VMEM_LIMIT,
        ),
        cost_estimate=pl.CostEstimate(
            flops=2 * rows * lanes,
            transcendentals=0,
            bytes_accessed=2 * rows * lanes * x2.dtype.itemsize,
        ),
    )(x2)


def scale_shift(x):
    """Equivalent to PtModule.forward: returns x * 2 + 3 elementwise."""
    orig_shape = x.shape
    total = x.size
    if total == 0:
        return x * 2 + 3
    flat = x.reshape(-1)

    # Fast path: lane-aligned total, no padding and no post-kernel slice.
    if total % _LANES == 0:
        rows = total // _LANES
        if rows % 8 == 0 or rows <= _SMALL_ROWS:
            return _run_slab(flat.reshape(rows, _LANES)).reshape(orig_shape)

    # Misaligned total: Pallas on the 4096-element-aligned prefix, plain fused
    # XLA on the small (< 4096 element) tail.  No materialized full-array pad.
    main = (total // _ALIGN) * _ALIGN
    tail_out = flat[main:] * 2 + 3
    if main == 0:
        return tail_out.reshape(orig_shape)
    main_out = _run_slab(flat[:main].reshape(main // _LANES, _LANES)).reshape(-1)
    return jnp.concatenate([main_out, tail_out]).reshape(orig_shape)


if __name__ == "__main__":
    key = jax.random.PRNGKey(0)
    k0, k1, k2 = jax.random.split(key, 3)

    # Primary test: shape implied by the module's forward (NCHW batch).
    x = jax.random.normal(k0, (2, 4, 16, 16), dtype=jnp.float32)
    out = jax.jit(scale_shift)(x)
    jax.block_until_ready(out)
    assert out.shape == x.shape and out.dtype == x.dtype
    assert jnp.allclose(out, x * 2 + 3, atol=1e-6, rtol=1e-6)

    # Multi-step grid with a partial edge block (rows=600 -> tile=304, grid=2).
    x_big = jax.random.normal(k1, (600, 512), dtype=jnp.float32)
    out_big = jax.jit(scale_shift)(x_big)
    jax.block_until_ready(out_big)
    assert jnp.allclose(out_big, x_big * 2 + 3, atol=1e-6, rtol=1e-6)

    # Lane-misaligned total: Pallas prefix + XLA tail path.
    x_odd = jax.random.normal(k2, (130, 520), dtype=jnp.float32)
    out_odd = jax.jit(scale_shift)(x_odd)
    jax.block_until_ready(out_odd)
    assert jnp.allclose(out_odd, x_odd * 2 + 3, atol=1e-6, rtol=1e-6)

    print("KERNEL_OK")
</pallas_src>

<mosaic_0001>
module attributes {stable_mosaic.version = 11 : i64} {
  func.func @_scale_shift_kernel(%arg0: i32, %arg1: memref<4x512xf32, #tpu.memory_space<vmem>>, %arg2: memref<4x512xf32, #tpu.memory_space<vmem>>) attributes {dimension_semantics = [#tpu.dimension_semantics<parallel>], iteration_bounds = array<i64: 1>, scalar_prefetch = 0 : i64, scratch_operands = 0 : i64, tpu.core_type = #tpu.core_type<tc>, window_params = [{transform_indices = @transform_0, window_bounds = array<i64: 4, 512>}, {transform_indices = @transform_1, window_bounds = array<i64: 4, 512>}]} {
    %c0 = arith.constant 0 : index
    %c0_0 = arith.constant 0 : index
    %0 = vector.load %arg1[%c0, %c0_0] : memref<4x512xf32, #tpu.memory_space<vmem>>, vector<4x512xf32>
    %cst = arith.constant 2.000000e+00 : f32
    %1 = vector.broadcast %cst : f32 to vector<4x512xf32>
    %2 = arith.mulf %0, %1 : vector<4x512xf32>
    %cst_1 = arith.constant 3.000000e+00 : f32
    %3 = vector.broadcast %cst_1 : f32 to vector<4x512xf32>
    %4 = arith.addf %2, %3 : vector<4x512xf32>
    %c0_2 = arith.constant 0 : index
    %c0_3 = arith.constant 0 : index
    %5 = vector.load %arg2[%c0_2, %c0_3] : memref<4x512xf32, #tpu.memory_space<vmem>>, vector<4x512xf32>
    tpu.vector_store %arg2[%c0_2, %c0_3], %4 {strides = array<i32>} : memref<4x512xf32, #tpu.memory_space<vmem>>, vector<4x512xf32>,
    return
  }
  func.func @transform_0(%arg0: i32) -> (i32, i32) {
    %c0_i32 = arith.constant 0 : i32
    %c0_i32_0 = arith.constant 0 : i32
    return %arg0, %c0_i32 : i32, i32
  }
  func.func @transform_1(%arg0: i32) -> (i32, i32) {
    %c0_i32 = arith.constant 0 : i32
    %c0_i32_0 = arith.constant 0 : i32
    return %arg0, %c0_i32 : i32, i32
  }
}

</mosaic_0001>

<llo_original>
// kernel: scale_shift.1
$region0: #{scale_shift.1}
  #allocation0 [shape = 'u32[]', space=smem, size = 0x4, offset = 0x4, fixed_abs, tag = 'smem constant byte address 0x4 - core index']
  #allocation1 [shape = 'u32[72,128]{1,0:T(1,128)}', space=vmem, size = 0x9000, scoped, tag = 'internal scratch']
  %s0 = inlined_call_operand.vmem [shape: f32[4,512], index: 0, kind: input, shape index: {}]
  %s1 = inlined_call_operand.vmem [shape: f32[4,512], index: 1, kind: output, shape index: {}]
  %s2 = sld [smem:[#allocation0]]
  $region14: #{scale_shift.1} parent=0
    _
  %s4 = ssub.s32 1, %s2
  %s5 = scalar_select 0, %s4, %s2
  // Predicated region
  $region2: #{scale_shift.1} parent=0 // pred_check
    _
  $region3: #{scale_shift.1} parent=0 // pred_check_branch
    %7 = sbr.rel (0) target = $region5
  $region4: #{scale_shift.1} parent=0 // pred_region
    _
  $region5: #{scale_shift.1} parent=0 // pred_fallthru
    _
  %v8 = vld [vmem:[%s0] sm:$0xff]
  %v9 = vld [vmem:[%s0 + $0x8] sm:$0xff]
  %v10 = vmul.f32 %v8, 2.0
  %v11 = vmul.f32 %v9, 2.0
  %v12 = vadd.f32 %v10, 3.0
  %v13 = vadd.f32 %v11, 3.0
  %14 = vst [vmem:[%s1] sm:$0xff] %v12
  %15 = vst [vmem:[%s1 + $0x8] sm:$0xff] %v13
  // Predicated region
  $region6: #{scale_shift.1} parent=0 // pred_check
    _
  $region7: #{scale_shift.1} parent=0 // pred_check_branch
    %17 = sbr.rel (0) target = $region9
  $region8: #{scale_shift.1} parent=0 // pred_region
    _
  $region9: #{scale_shift.1} parent=0 // pred_fallthru
    _
  // Predicated region
  $region10: #{scale_shift.1} parent=0 // pred_check
    _
  $region11: #{scale_shift.1} parent=0 // pred_check_branch
    %19 = sbr.rel (0) target = $region13
  $region12: #{scale_shift.1} parent=0 // pred_region
    _
  $region13: #{scale_shift.1} parent=0 // pred_fallthru
    _

</llo_original>
